<compile_context>
chip_gen: v6e
topology: v6e:2x2x1
jax: 0.10.0
libtpu: 0.0.40
codegen_flags: <defaults>
</compile_context>

<pallas_src>
import functools

import jax
import jax.numpy as jnp
from jax.experimental import pallas as pl


# ----------------------------------------------------------------------------
# Pallas kernel
# ----------------------------------------------------------------------------
def _make_kernel(B, N, H, O, F, Rx, Rb):
    """Build the fused kernel for static dims.

    Packed params slab layout (rows x cols, zero-padded elsewhere):
      [0:H,     0:2O    ]  wh_cat  = [w0[F:] | w1[F:]]      (H, 2O)
      [0:2N,    2O:2O+N ]  lap     = [L_real ; L_imag]      (2N, N)
      [Rx:Rx+F, 0:2O    ]  wx_cat  = [w0[:F] | w1[:F]]      (F, 2O)
      [Rb,      0:2BO   ]  bias tiled over (comp, batch)    (1, 2*B*O)
    Rx / Rb are sublane-aligned row offsets.
    """
    O2 = 2 * O

    def kernel(x_ref, h_ref, p_ref, out_ref):
        x = x_ref[...]                                   # (B*N, F)
        h = h_ref[...]                                   # (B*N, H)
        wh = p_ref[0:H, 0:O2]                            # (H, 2O)
        lap = p_ref[0:2 * N, O2:O2 + N]                  # (2N, N)
        wx = p_ref[Rx:Rx + F, 0:O2]                      # (F, 2O)
        bias = p_ref[Rb:Rb + 1, 0:2 * B * O]             # (1, 2*B*O)

        # Fused projection: cols [:O] = cat([x,h]) @ W0, cols [O:] = cat @ W1.
        proj = jnp.dot(h, wh, preferred_element_type=jnp.float32)      # (B*N, 2O)
        if F == 1:
            proj = proj + x * wx          # rank-1 broadcast, no degenerate K=1 matmul
        else:
            proj = proj + jnp.dot(x, wx, preferred_element_type=jnp.float32)

        # Relayout rows (b, n) -> node-major rows with batch folded onto lanes
        # so ALL batches / both complex parts share ONE Laplacian matmul.
        y0 = jnp.concatenate(
            [proj[b * N:(b + 1) * N, 0:O] for b in range(B)], axis=1)   # (N, B*O)
        z = jnp.concatenate(
            [proj[b * N:(b + 1) * N, O:O2] for b in range(B)], axis=1)  # (N, B*O)

        lz = jnp.dot(lap, z, preferred_element_type=jnp.float32)        # (2N, B*O)
        yr = lz[0:N, :]                                                  # L_real @ z
        yi = lz[N:2 * N, :]                                              # L_imag @ z

        # out_real = yr - yi ; out_imag = 2*y0 + yr + yi.  One lane-dense slab,
        # one hoisted bias broadcast, one full-width (N, 2*B*O) store.
        slab = jnp.concatenate([yr - yi, 2.0 * y0 + yr + yi], axis=1)    # (N, 2*B*O)
        out_ref[...] = slab + bias

    return kernel


# ----------------------------------------------------------------------------
# Wrapper
# ----------------------------------------------------------------------------
def tdgcn_graph_conv(inputs, hidden_state, kp):
    """TDGCNGraphConvolution.forward.

    inputs:       (B, N) or (B, N, F)
    hidden_state: (B, N * num_gru_units)
    kp:           packed kernel params from pack_kernel_params(batch_size=B)
    returns:      (B, 2 * N * output_dim)  == cat([out_real, out_imag], -1)
    """
    B, N = inputs.shape[:2]
    F = inputs.shape[2] if inputs.ndim == 3 else 1
    H, O = kp["num_gru_units"], kp["output_dim"]
    Rx, Rb = kp["Rx"], kp["Rb"]

    # Free row-major reshapes (no data movement) feeding the kernel.
    x_flat = inputs.reshape(B * N, F).astype(jnp.float32)
    h_flat = hidden_state.reshape(B * N, H).astype(jnp.float32)

    slab = pl.pallas_call(
        _make_kernel(B, N, H, O, F, Rx, Rb),
        out_shape=jax.ShapeDtypeStruct((N, 2 * B * O), jnp.float32),
        in_specs=[
            pl.BlockSpec((B * N, F), lambda: (0, 0)),
            pl.BlockSpec((B * N, H), lambda: (0, 0)),
            pl.BlockSpec(kp["mats"].shape, lambda: (0, 0)),
        ],
        out_specs=pl.BlockSpec((N, 2 * B * O), lambda: (0, 0)),
    )(x_flat, h_flat, kp["mats"])

    # slab[n, comp*B*O + b*O + o]  ->  out[b, comp*N*O + n*O + o]
    # 16 KB wrapper-side layout fix so the kernel store stays lane-dense.
    out = jnp.transpose(slab.reshape(N, 2, B, O), (2, 1, 0, 3))
    return out.reshape(B, 2 * N * O)


# ----------------------------------------------------------------------------
# Pure-JAX transcription of the torch forward (correctness oracle)
# ----------------------------------------------------------------------------
def reference_forward(params, inputs, hidden_state):
    B, N = inputs.shape[:2]
    F = inputs.shape[2] if inputs.ndim == 3 else 1
    H = params["num_gru_units"]
    O = params["output_dim"]
    C = H + F

    x = inputs.reshape(B, N, F).astype(jnp.float32)
    h = hidden_state.reshape(B, N, H).astype(jnp.float32)
    cat = jnp.concatenate([x, h], axis=2)                       # (B, N, C)
    X = jnp.transpose(cat, (1, 2, 0)).reshape(N, C * B)         # (N, C*B)

    def branch(L, W):
        T = (L @ X).reshape(N, C, B)
        T = jnp.transpose(T, (2, 0, 1)).reshape(B * N, C)
        return T @ W

    eye = jnp.eye(N, dtype=jnp.float32)
    y0 = branch(eye, params["w0"])            # process(): all four terms equal y0
    yr = branch(params["l_real"], params["w1"])
    yi = branch(params["l_imag"], params["w1"])

    real_real, imag_imag = y0 + yr, y0 + yi
    imag_real, real_imag = y0 + yr, y0 + yi
    out_real = real_real - imag_imag + params["bias"]
    out_imag = imag_real + real_imag + params["bias"]
    out_real = out_real.reshape(B, N * O)
    out_imag = out_imag.reshape(B, N * O)
    return jnp.concatenate([out_real, out_imag], axis=-1)


# ----------------------------------------------------------------------------
# Deterministic parameter construction + static-operand packing
# ----------------------------------------------------------------------------
def xavier_uniform(key, shape):
    # torch xavier_uniform_ on (2, C, O): fan_in = C*O, fan_out = 2*O.
    fan_in = shape[1] * shape[2]
    fan_out = shape[0] * shape[2]
    bound = (6.0 / (fan_in + fan_out)) ** 0.5
    return jax.random.uniform(key, shape, jnp.float32, -bound, bound)


def make_params(key, num_nodes, num_gru_units, output_dim, features=1,
                bias_init=1.0):
    N, H, F, O = num_nodes, num_gru_units, features, output_dim
    C = H + F
    k_adj, k_w = jax.random.split(key)

    # Synthetic sign-magnetic-Laplacian-style complex operator from adjacency.
    adj = jax.random.uniform(k_adj, (N, N), jnp.float32)
    a_sym = 0.5 * (adj + adj.T)
    d = jnp.sum(a_sym, axis=1)
    dinv = 1.0 / jnp.sqrt(d + 1e-6)
    norm = dinv[:, None] * a_sym * dinv[None, :]
    theta = jnp.pi * 0.25 * (adj - adj.T)
    l_real = jnp.eye(N, dtype=jnp.float32) - norm * jnp.cos(theta)
    l_imag = -norm * jnp.sin(theta)

    w = xavier_uniform(k_w, (2, C, O))
    return {
        "num_nodes": N, "num_gru_units": H, "output_dim": O, "features": F,
        "l_real": l_real, "l_imag": l_imag,
        "w0": w[0], "w1": w[1],                     # (C, O) each
        "bias": jnp.full((O,), bias_init, jnp.float32),
    }


def _round_up(x, m):
    return -(-x // m) * m


def pack_kernel_params(params, batch_size):
    """Pre-pack ALL static operands into one slab -> a single prologue DMA."""
    N, H = params["num_nodes"], params["num_gru_units"]
    O, F = params["output_dim"], params["features"]
    B = batch_size
    w0, w1 = params["w0"], params["w1"]

    wh_cat = jnp.concatenate([w0[F:], w1[F:]], axis=1)                   # (H, 2O)
    wx_cat = jnp.concatenate([w0[:F], w1[:F]], axis=1)                   # (F, 2O)
    lap = jnp.concatenate([params["l_real"], params["l_imag"]], axis=0)  # (2N, N)
    bias_full = jnp.tile(params["bias"], 2 * B)                          # (2*B*O,)

    Rx = _round_up(max(H, 2 * N), 8)        # wx row block (sublane-aligned)
    Rb = _round_up(Rx + F, 8)               # bias row (sublane-aligned)
    width = max(2 * O + N, 2 * B * O)

    mats = jnp.zeros((Rb + 1, width), jnp.float32)
    mats = mats.at[:H, :2 * O].set(wh_cat)
    mats = mats.at[:2 * N, 2 * O:2 * O + N].set(lap)
    mats = mats.at[Rx:Rx + F, :2 * O].set(wx_cat)
    mats = mats.at[Rb, :2 * B * O].set(bias_full)

    return {"num_gru_units": H, "output_dim": O, "features": F,
            "Rx": Rx, "Rb": Rb, "mats": mats}


# ----------------------------------------------------------------------------
# Main
# ----------------------------------------------------------------------------
if __name__ == "__main__":
    B, N, H, O = 2, 16, 32, 32   # batch, num_nodes, num_gru_units, output_dim

    key = jax.random.PRNGKey(0)
    k_params, k_inp, k_hid = jax.random.split(key, 3)

    params = make_params(k_params, num_nodes=N, num_gru_units=H, output_dim=O,
                         features=1, bias_init=1.0)
    kparams = pack_kernel_params(params, batch_size=B)

    inputs = jax.random.normal(k_inp, (B, N), jnp.float32)
    hidden_state = jax.random.normal(k_hid, (B, N * H), jnp.float32)

    fwd = jax.jit(functools.partial(tdgcn_graph_conv, kp=kparams))
    out = fwd(inputs, hidden_state)
    jax.block_until_ready(out)

    assert out.shape == (B, 2 * N * O)
    assert bool(jnp.all(jnp.isfinite(out)))

    ref = reference_forward(params, inputs, hidden_state)
    err = float(jnp.max(jnp.abs(out - ref)))
    assert err < 1e-3, f"max abs error vs reference = {err}"

    print("KERNEL_OK")
</pallas_src>

<mosaic_0001>
module attributes {stable_mosaic.version = 11 : i64} {
  func.func @kernel(%arg0: memref<32x1xf32, #tpu.memory_space<vmem>>, %arg1: memref<32x32xf32, #tpu.memory_space<vmem>>, %arg2: memref<41x128xf32, #tpu.memory_space<vmem>>, %arg3: memref<16x128xf32, #tpu.memory_space<vmem>>) attributes {dimension_semantics = [], scalar_prefetch = 0 : i64, scratch_operands = 0 : i64, tpu.core_type = #tpu.core_type<tc>} {
    %c0 = arith.constant 0 : index
    %c0_0 = arith.constant 0 : index
    %0 = vector.load %arg0[%c0, %c0_0] : memref<32x1xf32, #tpu.memory_space<vmem>>, vector<32x1xf32>
    %c0_1 = arith.constant 0 : index
    %c0_2 = arith.constant 0 : index
    %1 = vector.load %arg1[%c0_1, %c0_2] : memref<32x32xf32, #tpu.memory_space<vmem>>, vector<32x32xf32>
    %c0_3 = arith.constant 0 : index
    %c0_4 = arith.constant 0 : index
    %2 = vector.load %arg2[%c0_3, %c0_4] : memref<41x128xf32, #tpu.memory_space<vmem>>, vector<32x64xf32>
    %c0_5 = arith.constant 0 : index
    %c64 = arith.constant 64 : index
    %3 = vector.load %arg2[%c0_5, %c64] : memref<41x128xf32, #tpu.memory_space<vmem>>, vector<32x16xf32>
    %c32 = arith.constant 32 : index
    %c0_6 = arith.constant 0 : index
    %4 = vector.load %arg2[%c32, %c0_6] : memref<41x128xf32, #tpu.memory_space<vmem>>, vector<1x64xf32>
    %c40 = arith.constant 40 : index
    %c0_7 = arith.constant 0 : index
    %5 = vector.load %arg2[%c40, %c0_7] : memref<41x128xf32, #tpu.memory_space<vmem>>, vector<1x128xf32>
    %cst = arith.constant dense<0.000000e+00> : vector<32x64xf32>
    %6 = tpu.matmul %1, %2, %cst {dimension_numbers = #tpu.dot_dimension_numbers<[1], [0], [0], [1], [0, 0, 1, 1], [], []>} : vector<32x32xf32>, vector<32x64xf32>, vector<32x64xf32> -> vector<32x64xf32>
    %7 = vector.broadcast %0 : vector<32x1xf32> to vector<32x64xf32>
    %8 = vector.broadcast %4 : vector<1x64xf32> to vector<32x64xf32>
    %9 = arith.mulf %7, %8 : vector<32x64xf32>
    %10 = arith.addf %6, %9 : vector<32x64xf32>
    %11 = vector.extract_strided_slice %10 {offsets = [0, 0], sizes = [16, 32], strides = [1, 1]} : vector<32x64xf32> to vector<16x32xf32>
    %12 = vector.extract_strided_slice %10 {offsets = [16, 0], sizes = [16, 32], strides = [1, 1]} : vector<32x64xf32> to vector<16x32xf32>
    %13 = tpu.concatenate %11, %12 in 1 : vector<16x32xf32>, vector<16x32xf32> -> vector<16x64xf32>
    %14 = vector.extract_strided_slice %10 {offsets = [0, 32], sizes = [16, 32], strides = [1, 1]} : vector<32x64xf32> to vector<16x32xf32>
    %15 = vector.extract_strided_slice %10 {offsets = [16, 32], sizes = [16, 32], strides = [1, 1]} : vector<32x64xf32> to vector<16x32xf32>
    %16 = tpu.concatenate %14, %15 in 1 : vector<16x32xf32>, vector<16x32xf32> -> vector<16x64xf32>
    %cst_8 = arith.constant dense<0.000000e+00> : vector<32x64xf32>
    %17 = tpu.matmul %3, %16, %cst_8 {dimension_numbers = #tpu.dot_dimension_numbers<[1], [0], [0], [1], [0, 0, 1, 1], [], []>} : vector<32x16xf32>, vector<16x64xf32>, vector<32x64xf32> -> vector<32x64xf32>
    %18 = vector.extract_strided_slice %17 {offsets = [0, 0], sizes = [16, 64], strides = [1, 1]} : vector<32x64xf32> to vector<16x64xf32>
    %19 = vector.extract_strided_slice %17 {offsets = [16, 0], sizes = [16, 64], strides = [1, 1]} : vector<32x64xf32> to vector<16x64xf32>
    %20 = arith.subf %18, %19 : vector<16x64xf32>
    %cst_9 = arith.constant 2.000000e+00 : f32
    %21 = vector.broadcast %cst_9 : f32 to vector<16x64xf32>
    %22 = arith.mulf %21, %13 : vector<16x64xf32>
    %23 = arith.addf %22, %18 : vector<16x64xf32>
    %24 = arith.addf %23, %19 : vector<16x64xf32>
    %25 = tpu.concatenate %20, %24 in 1 : vector<16x64xf32>, vector<16x64xf32> -> vector<16x128xf32>
    %26 = vector.broadcast %5 : vector<1x128xf32> to vector<16x128xf32>
    %27 = arith.addf %25, %26 : vector<16x128xf32>
    %c0_10 = arith.constant 0 : index
    %c0_11 = arith.constant 0 : index
    %28 = vector.load %arg3[%c0_10, %c0_11] : memref<16x128xf32, #tpu.memory_space<vmem>>, vector<16x128xf32>
    tpu.vector_store %arg3[%c0_10, %c0_11], %27 {strides = array<i32>} : memref<16x128xf32, #tpu.memory_space<vmem>>, vector<16x128xf32>,
    return
  }
}

</mosaic_0001>

<llo_original>
// kernel: tdgcn_graph_conv.1
$region0: #{tdgcn_graph_conv.1}
  #allocation0 [shape = 'u32[]', space=smem, size = 0x4, offset = 0x4, fixed_abs, tag = 'smem constant byte address 0x4 - core index']
  #allocation1 [shape = 'u32[144,128]{1,0:T(1,128)}', space=vmem, size = 0x12000, scoped, tag = 'internal scratch']
  %s0 = inlined_call_operand.vmem [shape: f32[32,1], index: 0, kind: input, shape index: {}]
  %s1 = inlined_call_operand.vmem [shape: f32[32,32], index: 1, kind: input, shape index: {}]
  %s2 = inlined_call_operand.vmem [shape: f32[41,128], index: 2, kind: input, shape index: {}]
  %s3 = inlined_call_operand.vmem [shape: f32[16,128], index: 3, kind: output, shape index: {}]
  %s4 = sld [smem:[#allocation0]]
  $region22: #{tdgcn_graph_conv.1} parent=0
    _
  %s6 = ssub.s32 1, %s4
  %s7 = scalar_select 0, %s6, %s4
  // Predicated region
  $region2: #{tdgcn_graph_conv.1} parent=0 // pred_check
    _
  $region3: #{tdgcn_graph_conv.1} parent=0 // pred_check_branch
    %9 = sbr.rel (0) target = $region5
  $region4: #{tdgcn_graph_conv.1} parent=0 // pred_region
    _
  $region5: #{tdgcn_graph_conv.1} parent=0 // pred_fallthru
    _
  // Predicated region
  $region6: #{tdgcn_graph_conv.1} parent=0 // pred_check
    _
  $region7: #{tdgcn_graph_conv.1} parent=0 // pred_check_branch
    %11 = sbr.rel (0) target = $region9
  $region8: #{tdgcn_graph_conv.1} parent=0 // pred_region
    _
  $region9: #{tdgcn_graph_conv.1} parent=0 // pred_fallthru
    _
  // Predicated region
  $region10: #{tdgcn_graph_conv.1} parent=0 // pred_check
    _
  $region11: #{tdgcn_graph_conv.1} parent=0 // pred_check_branch
    %13 = sbr.rel (0) target = $region13
  $region12: #{tdgcn_graph_conv.1} parent=0 // pred_region
    _
  $region13: #{tdgcn_graph_conv.1} parent=0 // pred_fallthru
    _
  %v14 = vld [vmem:[%s0] sm:$0xff]
  %v15 = vld [vmem:[%s0 + $0x8] sm:$0xff]
  %v16 = vld [vmem:[%s0 + $0x10] sm:$0xff]
  %v17 = vld [vmem:[%s0 + $0x18] sm:$0xff]
  %v18 = vld [vmem:[%s1] sm:$0xff]
  %v19 = vld [vmem:[%s1 + $0x8] sm:$0xff]
  %v20 = vld [vmem:[%s1 + $0x10] sm:$0xff]
  %v21 = vld [vmem:[%s1 + $0x18] sm:$0xff]
  %v22 = vld [vmem:[%s2] sm:$0xff]
  %v23 = vld [vmem:[%s2 + $0x8] sm:$0xff]
  %v24 = vld [vmem:[%s2 + $0x10] sm:$0xff]
  %v25 = vld [vmem:[%s2 + $0x18] sm:$0xff]
  %v26 = vld [vmem:[%s2 + $0x20] sm:$0x1]
  %v27 = vld [vmem:[%s2 + $0x28] sm:$0x1]
  %29 = vset.pattern.permute.xlu0 0
  %30 = vperm.xlu0 %29, %v14
  %v31 = vpop.permute.xlu0 %30
  %34 = vset.pattern.permute.xlu0 0
  %35 = vperm.xlu0 %34, %v15
  %v36 = vpop.permute.xlu0 %35
  %39 = vset.pattern.permute.xlu0 0
  %40 = vperm.xlu0 %39, %v16
  %v41 = vpop.permute.xlu0 %40
  %44 = vset.pattern.permute.xlu0 0
  %45 = vperm.xlu0 %44, %v17
  %v46 = vpop.permute.xlu0 %45
  %v48 = vlaneseq
  %v49 = vshrl.u32 %v48, 7
  %v50 = vsub.s32 0, %v49
  %v51 = vrot.slane %v26, %v50
  %v52 = vmul.f32 %v31, %v51
  %v53 = vmul.f32 %v36, %v51
  %v54 = vmul.f32 %v41, %v51
  %v55 = vmul.f32 %v46, %v51
  %vm56 = vcmask 261120
  %v58 = vsel %vm56, %v18, 0
  %v61 = vsel %vm56, %v19, 0
  %v64 = vsel %vm56, %v20, 0
  %v67 = vsel %vm56, %v21, 0
  %69 = vmatprep.subr.mxu0 0.0
  %70 = vmatpush1.msra.mxu0 0.0
  %71 = vmatprep.subr.mxu0 0.0
  %72 = vmatpush1.msra.mxu0 0.0
  %73 = vmatprep.subr.mxu0 0.0
  %74 = vmatpush1.msra.mxu0 0.0
  %75 = vmatprep.subr.mxu0 0.0
  %76 = vmatpush1.msra.mxu0 0.0
  %77 = vmatprep.subr.mxu0 0.0
  %78 = vmatpush1.msra.mxu0 0.0
  %79 = vmatprep.subr.mxu0 0.0
  %80 = vmatpush1.msra.mxu0 0.0
  %81 = vmatprep.subr.mxu0 0.0
  %82 = vmatpush1.msra.mxu0 0.0
  %83 = vmatprep.subr.mxu0 0.0
  %84 = vmatpush1.msra.mxu0 0.0
  %85 = vmatprep.subr.mxu0 0.0
  %86 = vmatpush1.msra.mxu0 0.0
  %87 = vmatprep.subr.mxu0 0.0
  %88 = vmatpush1.msra.mxu0 0.0
  %89 = vmatprep.subr.mxu0 0.0
  %90 = vmatpush1.msra.mxu0 0.0
  %91 = vmatprep.subr.mxu0 0.0
  %92 = vmatpush1.msra.mxu0 0.0
  %93 = vmatprep.subr.mxu0 0.0
  %94 = vmatpush1.msra.mxu0 %v25
  %95 = vmatprep.subr.mxu0 0.0
  %96 = vmatpush1.msra.mxu0 %v24
  %97 = vmatprep.subr.mxu0 0.0
  %98 = vmatpush1.msra.mxu0 %v23
  %99 = vmatprep.subr.mxu0 0.0
  %100 = vmatpush1.msra.mxu0 %v22
  %101 = vmatprep.subr.mxu0 0.0
  %102 = vmatpush2.msra.mxu0 0.0
  %103 = vmatprep.subr.mxu0 0.0
  %104 = vmatpush2.msra.mxu0 0.0
  %105 = vmatprep.subr.mxu0 0.0
  %106 = vmatpush2.msra.mxu0 0.0
  %107 = vmatprep.subr.mxu0 0.0
  %108 = vmatpush2.msra.mxu0 0.0
  %109 = vmatprep.subr.mxu0 0.0
  %110 = vmatpush2.msra.mxu0 0.0
  %111 = vmatprep.subr.mxu0 0.0
  %112 = vmatpush2.msra.mxu0 0.0
  %113 = vmatprep.subr.mxu0 0.0
  %114 = vmatpush2.msra.mxu0 0.0
  %115 = vmatprep.subr.mxu0 0.0
  %116 = vmatpush2.msra.mxu0 0.0
  %117 = vmatprep.subr.mxu0 0.0
  %118 = vmatpush2.msra.mxu0 0.0
  %119 = vmatprep.subr.mxu0 0.0
  %120 = vmatpush2.msra.mxu0 0.0
  %121 = vmatprep.subr.mxu0 0.0
  %122 = vmatpush2.msra.mxu0 0.0
  %123 = vmatprep.subr.mxu0 0.0
  %124 = vmatpush2.msra.mxu0 0.0
  %125 = vmatprep.subr.mxu0 0.0
  %126 = vmatpush2.msra.mxu0 0.0
  %127 = vmatprep.subr.mxu0 0.0
  %128 = vmatpush2.msra.mxu0 0.0
  %129 = vmatprep.subr.mxu0 0.0
  %130 = vmatpush2.msra.mxu0 0.0
  %131 = vmatprep.subr.mxu0 0.0
  %132 = vmatpush2.msra.mxu0 0.0
  %133 = vmatprep.mubr.f32.mxu0 0.0
  %134 = vmatmul.mubr.f32.gmra.mxu0 %v58
  %v135 = vpop.f32.mrf.mxu0
  %v136 = vadd.f32 %v52, %v135
  %v137 = vpop.f32.mrf.mxu0
  %138 = vmatprep.mubr.f32.mxu0 0.0
  %139 = vmatmul.mubr.f32.gmra.mxu0 %v61
  %v140 = vpop.f32.mrf.mxu0
  %v141 = vadd.f32 %v53, %v140
  %v142 = vpop.f32.mrf.mxu0
  %143 = vmatprep.mubr.f32.mxu0 0.0
  %144 = vmatmul.mubr.f32.gmra.mxu0 %v64
  %v145 = vpop.f32.mrf.mxu0
  %v146 = vadd.f32 %v54, %v145
  %v147 = vpop.f32.mrf.mxu0
  %148 = vmatprep.mubr.f32.mxu0 0.0
  %149 = vmatmul.mubr.f32.gmra.mxu0 %v67
  %v150 = vpop.f32.mrf.mxu0
  %v151 = vadd.f32 %v55, %v150
  %v152 = vpop.f32.mrf.mxu0
  %153 = vdwg.mxu0
  %156 = vrot.lane.b32.xlu0 %v146, 32
  %v157 = vpop.permute.xlu0 %156
  %158 = vrot.lane.b32.xlu0 %v151, 32
  %v159 = vpop.permute.xlu0 %158
  %v162 = vsel %vm56, %v136, %v157
  %v163 = vsel %vm56, %v141, %v159
  %166 = vrot.lane.b32.xlu0 %v136, 96
  %v167 = vpop.permute.xlu0 %166
  %168 = vrot.lane.b32.xlu0 %v141, 96
  %v169 = vpop.permute.xlu0 %168
  %v172 = vsel %vm56, %v167, %v146
  %v173 = vsel %vm56, %v169, %v151
  %178 = vrot.lane.b32.xlu0 %v22, 64
  %v179 = vpop.permute.xlu0 %178
  %180 = vrot.lane.b32.xlu0 %v23, 64
  %v181 = vpop.permute.xlu0 %180
  %182 = vrot.lane.b32.xlu0 %v24, 64
  %v183 = vpop.permute.xlu0 %182
  %184 = vrot.lane.b32.xlu0 %v25, 64
  %v185 = vpop.permute.xlu0 %184
  %vm186 = vcmask 130048
  %v187 = vsel %vm186, %v179, 0
  %v189 = vsel %vm186, %v181, 0
  %v191 = vsel %vm186, %v183, 0
  %v193 = vsel %vm186, %v185, 0
  %195 = vmatprep.subr.mxu0 0.0
  %196 = vmatpush1.msra.mxu0 0.0
  %197 = vmatprep.subr.mxu0 0.0
  %198 = vmatpush1.msra.mxu0 0.0
  %199 = vmatprep.subr.mxu0 0.0
  %200 = vmatpush1.msra.mxu0 0.0
  %201 = vmatprep.subr.mxu0 0.0
  %202 = vmatpush1.msra.mxu0 0.0
  %203 = vmatprep.subr.mxu0 0.0
  %204 = vmatpush1.msra.mxu0 0.0
  %205 = vmatprep.subr.mxu0 0.0
  %206 = vmatpush1.msra.mxu0 0.0
  %207 = vmatprep.subr.mxu0 0.0
  %208 = vmatpush1.msra.mxu0 0.0
  %209 = vmatprep.subr.mxu0 0.0
  %210 = vmatpush1.msra.mxu0 0.0
  %211 = vmatprep.subr.mxu0 0.0
  %212 = vmatpush1.msra.mxu0 0.0
  %213 = vmatprep.subr.mxu0 0.0
  %214 = vmatpush1.msra.mxu0 0.0
  %215 = vmatprep.subr.mxu0 0.0
  %216 = vmatpush1.msra.mxu0 0.0
  %217 = vmatprep.subr.mxu0 0.0
  %218 = vmatpush1.msra.mxu0 0.0
  %219 = vmatprep.subr.mxu0 0.0
  %220 = vmatpush1.msra.mxu0 0.0
  %221 = vmatprep.subr.mxu0 0.0
  %222 = vmatpush1.msra.mxu0 0.0
  %223 = vmatprep.subr.mxu0 0.0
  %224 = vmatpush1.msra.mxu0 %v173
  %225 = vmatprep.subr.mxu0 0.0
  %226 = vmatpush1.msra.mxu0 %v172
  %227 = vmatprep.subr.mxu0 0.0
  %228 = vmatpush2.msra.mxu0 0.0
  %229 = vmatprep.subr.mxu0 0.0
  %230 = vmatpush2.msra.mxu0 0.0
  %231 = vmatprep.subr.mxu0 0.0
  %232 = vmatpush2.msra.mxu0 0.0
  %233 = vmatprep.subr.mxu0 0.0
  %234 = vmatpush2.msra.mxu0 0.0
  %235 = vmatprep.subr.mxu0 0.0
  %236 = vmatpush2.msra.mxu0 0.0
  %237 = vmatprep.subr.mxu0 0.0
  %238 = vmatpush2.msra.mxu0 0.0
  %239 = vmatprep.subr.mxu0 0.0
  %240 = vmatpush2.msra.mxu0 0.0
  %241 = vmatprep.subr.mxu0 0.0
  %242 = vmatpush2.msra.mxu0 0.0
  %243 = vmatprep.subr.mxu0 0.0
  %244 = vmatpush2.msra.mxu0 0.0
  %245 = vmatprep.subr.mxu0 0.0
  %246 = vmatpush2.msra.mxu0 0.0
  %247 = vmatprep.subr.mxu0 0.0
  %248 = vmatpush2.msra.mxu0 0.0
  %249 = vmatprep.subr.mxu0 0.0
  %250 = vmatpush2.msra.mxu0 0.0
  %251 = vmatprep.subr.mxu0 0.0
  %252 = vmatpush2.msra.mxu0 0.0
  %253 = vmatprep.subr.mxu0 0.0
  %254 = vmatpush2.msra.mxu0 0.0
  %255 = vmatprep.subr.mxu0 0.0
  %256 = vmatpush2.msra.mxu0 0.0
  %257 = vmatprep.subr.mxu0 0.0
  %258 = vmatpush2.msra.mxu0 0.0
  %259 = vmatprep.mubr.f32.mxu0 0.0
  %260 = vmatmul.mubr.f32.gmra.mxu0 %v187
  %v261 = vpop.f32.mrf.mxu0
  %v262 = vadd.f32 0.0, %v261
  %v263 = vpop.f32.mrf.mxu0
  %264 = vmatprep.mubr.f32.mxu0 0.0
  %265 = vmatmul.mubr.f32.gmra.mxu0 %v189
  %v266 = vpop.f32.mrf.mxu0
  %v267 = vadd.f32 0.0, %v266
  %v268 = vpop.f32.mrf.mxu0
  %269 = vmatprep.mubr.f32.mxu0 0.0
  %270 = vmatmul.mubr.f32.gmra.mxu0 %v191
  %v271 = vpop.f32.mrf.mxu0
  %v272 = vadd.f32 0.0, %v271
  %v273 = vpop.f32.mrf.mxu0
  %274 = vmatprep.mubr.f32.mxu0 0.0
  %275 = vmatmul.mubr.f32.gmra.mxu0 %v193
  %v276 = vpop.f32.mrf.mxu0
  %v277 = vadd.f32 0.0, %v276
  %v278 = vpop.f32.mrf.mxu0
  %279 = vdwg.mxu0
  %v280 = vsub.f32 %v262, %v272
  %v281 = vsub.f32 %v267, %v277
  %v282 = vmul.f32 %v162, 2.0
  %v283 = vmul.f32 %v163, 2.0
  %v284 = vadd.f32 %v282, %v262
  %v285 = vadd.f32 %v283, %v267
  %v286 = vadd.f32 %v284, %v272
  %v287 = vadd.f32 %v285, %v277
  %290 = vrot.lane.b32.xlu0 %v286, 64
  %v291 = vpop.permute.xlu0 %290
  %292 = vrot.lane.b32.xlu0 %v287, 64
  %v293 = vpop.permute.xlu0 %292
  %vm296 = vcmask 523264
  %v297 = vsel %vm296, %v280, %v291
  %v298 = vsel %vm296, %v281, %v293
  %v299 = vlaneseq
  %v300 = vshrl.u32 %v299, 7
  %v301 = vsub.s32 0, %v300
  %v302 = vrot.slane %v27, %v301
  %v303 = vadd.f32 %v297, %v302
  %v304 = vadd.f32 %v298, %v302
  %305 = vst [vmem:[%s3] sm:$0xff] %v303
  %306 = vst [vmem:[%s3 + $0x8] sm:$0xff] %v304
  // Predicated region
  $region14: #{tdgcn_graph_conv.1} parent=0 // pred_check
    _
  $region15: #{tdgcn_graph_conv.1} parent=0 // pred_check_branch
    %308 = sbr.rel (0) target = $region17
  $region16: #{tdgcn_graph_conv.1} parent=0 // pred_region
    _
  $region17: #{tdgcn_graph_conv.1} parent=0 // pred_fallthru
    _
  // Predicated region
  $region18: #{tdgcn_graph_conv.1} parent=0 // pred_check
    _
  $region19: #{tdgcn_graph_conv.1} parent=0 // pred_check_branch
    %310 = sbr.rel (0) target = $region21
  $region20: #{tdgcn_graph_conv.1} parent=0 // pred_region
    _
  $region21: #{tdgcn_graph_conv.1} parent=0 // pred_fallthru
    _

</llo_original>
